<compile_context>
chip_gen: v5e
topology: v5e:2x2
jax: 0.10.0
libtpu: 0.0.40
codegen_flags: <defaults>
</compile_context>

<pallas_src>
import jax
import jax.numpy as jnp
from jax.experimental import pallas as pl
from jax.experimental.pallas import tpu as pltpu


def _neg_kernel(x_ref, o_ref):
    # Elementwise negation of the whole VMEM tile (pure VPU work).
    o_ref[...] = -x_ref[...]


_LANE = 128
_MAX_COLS = 8192                       # cap slab width; keeps tiles rectangular
_TARGET_TILE_BYTES = 4 * 1024 * 1024   # ~4 MiB tiles amortize ~0.35 us/step overhead
_MIN_SPLIT_BYTES = 4 * 1024 * 1024     # above this, force >= 2 grid steps (v7x megacore)
_SMALL_BYTES = 1 * 1024 * 1024         # below this, plain -x beats a kernel launch


def _choose_cols(n):
    """Widest multiple-of-128 divisor of n (<= _MAX_COLS) leaving >= 8 rows.

    Falls back to the narrowest such divisor (full sublane packing beats a
    1-row slab).  Returns None if n has no multiple-of-128 divisor.
    """
    best_wide = None
    narrowest = None
    c = _LANE
    top = min(n, _MAX_COLS)
    while c <= top:
        if n % c == 0:
            if narrowest is None:
                narrowest = c
            if n // c >= 8:
                best_wide = c
        c += _LANE
    return best_wide if best_wide is not None else narrowest


def neg_pallas(x, *, force_pallas=False):
    """y = -x via a Pallas TPU kernel.

    Falls back to plain jnp negation when the kernel cannot help: tiny inputs
    (launch overhead dominates) or element counts with no multiple-of-128
    divisor (a pad + slice would add a full extra HBM pass to a bandwidth-
    bound op).
    """
    orig_shape = x.shape
    dtype = x.dtype
    n = x.size
    if n == 0:
        return x
    itemsize = jnp.dtype(dtype).itemsize

    # Small-input fast path: XLA fuses the negation for free.
    if not force_pallas and n * itemsize < _SMALL_BYTES:
        return -x

    cols = _choose_cols(n)
    if cols is None:
        # Ragged element count: plain elementwise negation is already at the
        # HBM roofline; padding would double traffic.
        return -x

    rows = n // cols
    x2 = x.reshape(rows, cols)  # lane-dense 2D slab (free bitcast reshape)

    # Sublane multiple for packed dtypes (8 for 4B, 16 for 2B, 32 for 1B).
    sub = 8 if itemsize >= 4 else (16 if itemsize == 2 else 32)

    # ---- ~4 MiB row tile, multiple of `sub` -----------------------------
    block_rows = (_TARGET_TILE_BYTES // (cols * itemsize)) // sub * sub
    block_rows = max(sub, block_rows)

    slab_bytes = rows * cols * itemsize
    if slab_bytes > _MIN_SPLIT_BYTES:
        # Guarantee >= 2 grid steps so ("parallel",) shards across both v7x
        # TensorCores (and both HBM paths) even for mid-size inputs.
        half_rows = pl.cdiv(pl.cdiv(rows, 2), sub) * sub
        block_rows = max(sub, min(block_rows, half_rows))
    if block_rows >= rows:
        block_rows = rows  # full extent: always a legal block shape

    grid = (pl.cdiv(rows, block_rows),)

    # ---- explicit VMEM budget: double-buffered in + out + headroom -------
    tile_bytes = block_rows * cols * itemsize
    vmem_limit = min(48 * 1024 * 1024,
                     max(8 * 1024 * 1024, 4 * tile_bytes + 2 * 1024 * 1024))

    out = pl.pallas_call(
        _neg_kernel,
        out_shape=jax.ShapeDtypeStruct((rows, cols), dtype),
        grid_spec=pltpu.PrefetchScalarGridSpec(
            num_scalar_prefetch=0,
            grid=grid,
            in_specs=[pl.BlockSpec((block_rows, cols), lambda i: (i, 0))],
            out_specs=pl.BlockSpec((block_rows, cols), lambda i: (i, 0)),
        ),
        compiler_params=pltpu.CompilerParams(
            dimension_semantics=("parallel",),
            vmem_limit_bytes=vmem_limit,
        ),
        cost_estimate=pl.CostEstimate(
            flops=0,                      # pure sign flip; bandwidth-bound
            transcendentals=0,
            bytes_accessed=2 * n * itemsize,
        ),
    )(x2)

    return out.reshape(orig_shape)


if __name__ == "__main__":
    key = jax.random.PRNGKey(0)
    k1, k2, k3 = jax.random.split(key, 3)

    # 1) Small NCHW input consistent with the test module; force the Pallas
    #    path so the kernel itself is compiled, run, and verified.
    x_small = jax.random.normal(k1, (2, 4, 16, 16), dtype=jnp.float32)
    y_small = jax.block_until_ready(neg_pallas(x_small, force_pallas=True))
    assert y_small.shape == x_small.shape and y_small.dtype == x_small.dtype
    assert jnp.array_equal(y_small, -x_small), "Pallas path mismatch"

    # Default dispatch (small-input fast path) must agree too.
    y_fast = jax.block_until_ready(neg_pallas(x_small))
    assert jnp.array_equal(y_fast, -x_small), "Fast path mismatch"

    # 2) Medium slab (~8 MiB) to exercise the multi-step, two-core grid.
    x_med = jax.random.normal(k2, (16, 16, 64, 128), dtype=jnp.float32)
    y_med = jax.block_until_ready(neg_pallas(x_med))
    assert jnp.array_equal(y_med, -x_med), "Multi-step grid mismatch"

    # 3) Ragged element count -> plain-jnp fallback (no pad/slice HBM pass).
    x_rag = jax.random.normal(k3, (2, 3, 5, 7), dtype=jnp.float32)
    y_rag = jax.block_until_ready(neg_pallas(x_rag))
    assert jnp.array_equal(y_rag, -x_rag), "Ragged fallback mismatch"

    print("KERNEL_OK")
</pallas_src>

<mosaic_0001>
module attributes {stable_mosaic.version = 11 : i64} {
  func.func @_neg_kernel(%arg0: i32, %arg1: memref<8x256xf32, #tpu.memory_space<vmem>>, %arg2: memref<8x256xf32, #tpu.memory_space<vmem>>) attributes {dimension_semantics = [#tpu.dimension_semantics<parallel>], iteration_bounds = array<i64: 1>, scalar_prefetch = 0 : i64, scratch_operands = 0 : i64, tpu.core_type = #tpu.core_type<tc>, window_params = [{transform_indices = @transform_0, window_bounds = array<i64: 8, 256>}, {transform_indices = @transform_1, window_bounds = array<i64: 8, 256>}]} {
    %c0 = arith.constant 0 : index
    %c0_0 = arith.constant 0 : index
    %0 = vector.load %arg1[%c0, %c0_0] : memref<8x256xf32, #tpu.memory_space<vmem>>, vector<8x256xf32>
    %cst = arith.constant 0.000000e+00 : f32
    %1 = vector.broadcast %cst : f32 to vector<8x256xf32>
    %2 = arith.subf %1, %0 : vector<8x256xf32>
    %c0_1 = arith.constant 0 : index
    %c0_2 = arith.constant 0 : index
    %3 = vector.load %arg2[%c0_1, %c0_2] : memref<8x256xf32, #tpu.memory_space<vmem>>, vector<8x256xf32>
    tpu.vector_store %arg2[%c0_1, %c0_2], %2 {strides = array<i32>} : memref<8x256xf32, #tpu.memory_space<vmem>>, vector<8x256xf32>,
    return
  }
  func.func @transform_0(%arg0: i32) -> (i32, i32) {
    %c0_i32 = arith.constant 0 : i32
    %c0_i32_0 = arith.constant 0 : i32
    return %arg0, %c0_i32 : i32, i32
  }
  func.func @transform_1(%arg0: i32) -> (i32, i32) {
    %c0_i32 = arith.constant 0 : i32
    %c0_i32_0 = arith.constant 0 : i32
    return %arg0, %c0_i32 : i32, i32
  }
}

</mosaic_0001>

<llo_original>
// kernel: tpu_custom_call.1
$region0: #{tpu_custom_call.1}
  #allocation0 [shape = 'u32[]', space=smem, size = 0x4, offset = 0x4, fixed_abs, tag = 'smem constant byte address 0x4 - core index']
  #allocation1 [shape = 'u32[72,128]{1,0:T(1,128)}', space=vmem, size = 0x9000, scoped, tag = 'internal scratch']
  %s0 = inlined_call_operand.hbm [shape: f32[8,256], index: 0, kind: input, shape index: {}]
  %s1 = inlined_call_operand.hbm [shape: f32[8,256], index: 1, kind: output, shape index: {}]
  %s2 = sld [smem:[#allocation0]]
  $region18: #{tpu_custom_call.1} parent=0
    _
  %s4 = ssub.s32 1, %s2
  %s5 = scalar_select 0, %s4, %s2
  $region1: #{tpu_custom_call.1} parent=0
    #allocation2 [shape = 'u8[8192]{0}', space=vmem, size = 0x2000, scoped, tag = 'input window, operand 0, single buffered']
    #allocation3 [shape = 's32[1]{0}', space=sflag, size = 0x4, scoped, tag = 'scoped memory for tpu_custom_call.1']
    #allocation4 [shape = 's32[1]{0}', space=sflag, size = 0x4, scoped, tag = 'scoped memory for tpu_custom_call.1']
    #allocation5 [shape = 'u8[8192]{0}', space=vmem, size = 0x2000, scoped, tag = 'output window, operand 0, single buffered']
    %6 = vsyncpa [#allocation3], 0
    %7 = vsyncpa [#allocation4], 0
    // Predicated region
    $region2: #{tpu_custom_call.1} parent=1 // pred_check
      _
    $region3: #{tpu_custom_call.1} parent=1 // pred_check_branch
      %9 = sbr.rel (0) target = $region5
    $region4: #{tpu_custom_call.1} parent=1 // pred_region
      %11 = vsyncadd [#allocation3], 0
      %s13 = sshll.u32 %s0, 4
      %s14 = int_to_ptr.hbm [resolvable:$true] %s13
      %s15 = sshll.u32 [#allocation2], 4
      %s16 = int_to_ptr.vmem [resolvable:$true] %s15
      %18 = dma.hbm_to_vmem [thread:$0]  %s14, 256, %s16, [#allocation3]
    $region5: #{tpu_custom_call.1} parent=1 // pred_fallthru
      _
    // Predicated region
    $region6: #{tpu_custom_call.1} parent=1 // pred_check
      _
    $region7: #{tpu_custom_call.1} parent=1 // pred_check_branch
      %20 = sbr.rel (0) target = $region9
    $region8: #{tpu_custom_call.1} parent=1 // pred_region
      %22 = dma.done [#allocation3], 256
    $region9: #{tpu_custom_call.1} parent=1 // pred_fallthru
      _
    %v23 = vld [vmem:[#allocation2] sm:$0xff]
    %v24 = vld [vmem:[#allocation2 + $0x8] sm:$0xff]
    %v25 = vsub.f32 0.0, %v23
    %v26 = vsub.f32 0.0, %v24
    %27 = vst [vmem:[#allocation5] sm:$0xff] %v25
    %28 = vst [vmem:[#allocation5 + $0x8] sm:$0xff] %v26
    // Predicated region
    $region10: #{tpu_custom_call.1} parent=1 // pred_check
      _
    $region11: #{tpu_custom_call.1} parent=1 // pred_check_branch
      %30 = sbr.rel (0) target = $region13
    $region12: #{tpu_custom_call.1} parent=1 // pred_region
      %32 = vsyncadd [#allocation4], 0
      %s34 = sshll.u32 [#allocation5], 4
      %s35 = int_to_ptr.vmem [resolvable:$true] %s34
      %s36 = sshll.u32 %s1, 4
      %s37 = int_to_ptr.hbm [resolvable:$true] %s36
      %39 = dma.vmem_to_hbm [thread:$0]  %s35, 256, %s37, [#allocation4]
    $region13: #{tpu_custom_call.1} parent=1 // pred_fallthru
      _
    // Predicated region
    $region14: #{tpu_custom_call.1} parent=1 // pred_check
      _
    $region15: #{tpu_custom_call.1} parent=1 // pred_check_branch
      %41 = sbr.rel (0) target = $region17
    $region16: #{tpu_custom_call.1} parent=1 // pred_region
      %43 = dma.done [#allocation4], 256
    $region17: #{tpu_custom_call.1} parent=1 // pred_fallthru
      _
    %44 = vsyncpa [#allocation3], 1
    %45 = vsyncpa [#allocation4], 1

</llo_original>
